<compile_context>
chip_gen: v7x
topology: tpu7x:2x2x1
jax: 0.10.0
libtpu: 0.0.40
codegen_flags: <defaults>
</compile_context>

<pallas_src>
import numpy as np
import jax
import jax.numpy as jnp
from jax import lax
from jax.experimental import pallas as pl
from jax.experimental.pallas import tpu as pltpu

# ----- hyperparameters (structurally identical to the module defaults, small) ---
F1 = 4          # F1
KL = 8          # kernel_length (even, like 64 in the original)
P1 = 4          # pool_length
D = 2           # depth multiplier
C = 4           # in_channels (EEG electrodes)
BATCH = 2
SEQ = 64
K2 = 16         # second conv kernel width (hard-coded in the module)
PAD1 = KL // 2
PAD2 = K2 // 2
P2 = 7          # second pool width (hard-coded in the module)
EPS = 1e-3      # BatchNorm eps

FC = F1 * C
FD = F1 * D
SEQP = SEQ + 2 * PAD1
W1 = SEQ + 2 * PAD1 - KL + 1      # width after temporal conv
W2 = W1 // P1                     # width after pool1
W2P = W2 + 2 * PAD2               # padded width for second conv
W3 = W2 + 2 * PAD2 - K2 + 1       # width after second conv
W4 = W3 // P2                     # width after pool2


# ------------------------------- Pallas kernel ---------------------------------
def convblock_kernel(x_ref, w1_ref, bias1_ref, pp1_ref, w2_ref, bias2_ref,
                     p2_ref, out_ref):
    # x: (B*C, SEQP)  -- batch packed along sublanes, time along lanes.
    x = x_ref[...]

    # Stage 1: temporal conv + bn1 + grouped spatial conv + bn2, all folded into
    # one im2col matmul.  Stack the KL shifted time-slices along sublanes
    # (each slice is B*C = 8 rows -> sublane-aligned concat).
    xcol = jnp.concatenate([x[:, k:k + W1] for k in range(KL)], axis=0)   # (KL*B*C, W1)
    y = jnp.dot(w1_ref[...], xcol,
                preferred_element_type=jnp.float32) + bias1_ref[...]      # (B*FD, W1)
    y = jnp.where(y > 0, y, jnp.exp(y) - 1.0)                             # ELU

    # AvgPool2d((1,P1)) as a matmul; the pool matrix also emits the PAD2 zero
    # columns needed by the second conv, so no scratch / in-kernel padding.
    z = jnp.dot(y, pp1_ref[...], preferred_element_type=jnp.float32)      # (B*FD, W2P)

    # Stage 2: (1,K2) channel-mixing conv + bn3 as one im2col matmul.
    # Each shifted slice is B*FD = 16 rows -> sublane-aligned concat.
    zcol = jnp.concatenate([z[:, k:k + W3] for k in range(K2)], axis=0)   # (K2*B*FD, W3)
    y = jnp.dot(w2_ref[...], zcol,
                preferred_element_type=jnp.float32) + bias2_ref[...]      # (B*FD, W3)
    y = jnp.where(y > 0, y, jnp.exp(y) - 1.0)                             # ELU

    # AvgPool2d((1,P2)) as a matmul; single store of the whole batch.
    out_ref[...] = jnp.dot(y, p2_ref[...],
                           preferred_element_type=jnp.float32).astype(out_ref.dtype)


# ------------------------------- glue / params ---------------------------------
def renorm_maxnorm(w, maxnorm=1.0):
    # torch.renorm(w, p=2, dim=0, maxnorm): per-output-filter L2 max-norm
    norms = jnp.sqrt(jnp.sum(w * w, axis=(1, 2, 3), keepdims=True))
    factor = jnp.where(norms > maxnorm, maxnorm / jnp.maximum(norms, 1e-12), 1.0)
    return w * factor


def bn_affine(gamma, beta, mean, var):
    scale = gamma / jnp.sqrt(var + EPS)
    shift = beta - mean * scale
    return scale, shift


def init_params(key):
    ks = jax.random.split(key, 6)

    def glorot(k, shape):
        recfield = int(np.prod(shape[2:]))
        fan_in = shape[1] * recfield
        fan_out = shape[0] * recfield
        a = np.sqrt(6.0 / (fan_in + fan_out))
        return jax.random.uniform(k, shape, jnp.float32, -a, a)

    def bn(k, n):
        k1, k2_, k3, k4 = jax.random.split(k, 4)
        gamma = 1.0 + 0.1 * jax.random.normal(k1, (n,), jnp.float32)
        beta = 0.1 * jax.random.normal(k2_, (n,), jnp.float32)
        mean = 0.1 * jax.random.normal(k3, (n,), jnp.float32)
        var = 1.0 + 0.1 * jnp.abs(jax.random.normal(k4, (n,), jnp.float32))
        return gamma, beta, mean, var

    return dict(
        wt=glorot(ks[0], (F1, 1, 1, KL)),        # temporal_conv.weight
        ws=glorot(ks[1], (FD, 1, C, 1)),         # spat_conv.weight (groups=F1)
        wc=glorot(ks[2], (FD, FD, 1, K2)),       # conv.weight
        bn1=bn(ks[3], F1), bn2=bn(ks[4], FD), bn3=bn(ks[5], FD),
    )


def convblock_pallas(x, params):
    # ------------------ host-side weight folding (runs once) -------------------
    wt = np.asarray(params['wt'])[:, 0, 0, :]                       # (F1, KL)
    ws = np.asarray(renorm_maxnorm(params['ws']))[:, 0, :, 0]       # (FD, C)
    wc = np.asarray(params['wc'])[:, :, 0, :]                       # (FD, FD, K2)
    s1, b1 = (np.asarray(v) for v in bn_affine(*params['bn1']))
    s2, b2 = (np.asarray(v) for v in bn_affine(*params['bn2']))
    s3, b3 = (np.asarray(v) for v in bn_affine(*params['bn3']))

    # grouped spatial conv as block-diagonal (FD, FC), fold bn1 (columns) & bn2 (rows)
    wsbd = np.zeros((FD, FC), np.float32)
    ws_g = ws.reshape(F1, D, C)
    for f in range(F1):
        wsbd[f * D:(f + 1) * D, f * C:(f + 1) * C] = ws_g[f]
    s1e = np.repeat(s1, C)
    b1e = np.repeat(b1, C)
    W_spat = s2[:, None] * wsbd * s1e[None, :]                      # (FD, FC)
    b_spat = s2 * (wsbd @ b1e) + b2                                 # (FD,)

    # fold the temporal conv into the spatial matmul: Weff[d, c, k]
    Weff = np.zeros((FD, C, KL), np.float32)
    for f in range(F1):
        Weff += W_spat[:, f * C:(f + 1) * C][:, :, None] * wt[f][None, None, :]

    # stage-1 im2col weight, batch-block-diagonal: (B*FD, KL*B*C)
    w1m = np.zeros((BATCH * FD, KL * BATCH * C), np.float32)
    for k in range(KL):
        for b in range(BATCH):
            w1m[b * FD:(b + 1) * FD,
                k * BATCH * C + b * C:k * BATCH * C + (b + 1) * C] = Weff[:, :, k]
    bias1 = np.tile(b_spat[:, None], (BATCH, 1))                    # (B*FD, 1)

    # avg-pool-1 matrix with the conv-2 zero padding folded in: (W1, W2P)
    pp1 = np.zeros((W1, W2P), np.float32)
    for j in range(W2):
        pp1[j * P1:(j + 1) * P1, PAD2 + j] = 1.0 / P1

    # stage-2 im2col weight (conv (1,16) with bn3 folded), batch-block-diag
    w2m = np.zeros((BATCH * FD, K2 * BATCH * FD), np.float32)
    for k in range(K2):
        wk = s3[:, None] * wc[:, :, k]                              # (FD, FD)
        for b in range(BATCH):
            w2m[b * FD:(b + 1) * FD,
                k * BATCH * FD + b * FD:k * BATCH * FD + (b + 1) * FD] = wk
    bias2 = np.tile(b3[:, None], (BATCH, 1))                        # (B*FD, 1)

    # avg-pool-2 matrix: (W3, W4)
    p2m = np.zeros((W3, W4), np.float32)
    for j in range(W4):
        p2m[j * P2:(j + 1) * P2, j] = 1.0 / P2

    # pad raw input along time, pack batch onto sublanes: (B*C, SEQP)
    xp = jnp.pad(x, ((0, 0), (0, 0), (PAD1, PAD1))).reshape(BATCH * C, SEQP)

    # Grid-less call: every operand is a full-array VMEM ref (no pipelining /
    # double-buffering needed for a problem this small).
    vmem = pl.BlockSpec(memory_space=pltpu.MemorySpace.VMEM)

    out = pl.pallas_call(
        convblock_kernel,
        out_shape=jax.ShapeDtypeStruct((BATCH * FD, W4), jnp.float32),
        in_specs=[vmem] * 7,
        out_specs=vmem,
    )(xp, jnp.asarray(w1m), jnp.asarray(bias1), jnp.asarray(pp1),
      jnp.asarray(w2m), jnp.asarray(bias2), jnp.asarray(p2m))

    # back to PyTorch NCHW: (B, F1*D, 1, W4)
    return out.reshape(BATCH, FD, 1, W4)


# --------------------------- pure-JAX reference --------------------------------
def ref_forward(x, params):
    wt = params['wt']
    ws = renorm_maxnorm(params['ws'])
    wc = params['wc']
    s1, b1 = bn_affine(*params['bn1'])
    s2, b2 = bn_affine(*params['bn2'])
    s3, b3 = bn_affine(*params['bn3'])
    dn = ('NCHW', 'OIHW', 'NCHW')
    hi = lax.Precision.HIGHEST

    y = x[:, None, :, :]                                           # b c s -> b 1 c s
    y = lax.conv_general_dilated(y, wt, (1, 1), [(0, 0), (PAD1, PAD1)],
                                 dimension_numbers=dn, precision=hi)
    y = y * s1[None, :, None, None] + b1[None, :, None, None]
    y = lax.conv_general_dilated(y, ws, (1, 1), [(0, 0), (0, 0)],
                                 dimension_numbers=dn, feature_group_count=F1,
                                 precision=hi)
    y = y * s2[None, :, None, None] + b2[None, :, None, None]
    y = jnp.where(y > 0, y, jnp.exp(y) - 1.0)
    y = lax.reduce_window(y, 0.0, lax.add, (1, 1, 1, P1), (1, 1, 1, P1), 'VALID') / P1
    y = lax.conv_general_dilated(y, wc, (1, 1), [(0, 0), (PAD2, PAD2)],
                                 dimension_numbers=dn, precision=hi)
    y = y * s3[None, :, None, None] + b3[None, :, None, None]
    y = jnp.where(y > 0, y, jnp.exp(y) - 1.0)
    y = lax.reduce_window(y, 0.0, lax.add, (1, 1, 1, P2), (1, 1, 1, P2), 'VALID') / P2
    return y


# ------------------------------------ main --------------------------------------
if __name__ == "__main__":
    key = jax.random.PRNGKey(0)
    kx, kp = jax.random.split(key)
    x = jax.random.normal(kx, (BATCH, C, SEQ), jnp.float32)
    params = init_params(kp)

    out = convblock_pallas(x, params)
    out = jax.block_until_ready(out)

    ref = ref_forward(x, params)
    assert out.shape == (BATCH, FD, 1, W4), out.shape
    np.testing.assert_allclose(np.asarray(out), np.asarray(ref), rtol=2e-2, atol=2e-2)

    print("KERNEL_OK")
</pallas_src>

<mosaic_0001>
module attributes {stable_mosaic.version = 11 : i64} {
  func.func @convblock_kernel(%arg0: memref<8x72xf32, #tpu.memory_space<vmem>>, %arg1: memref<16x64xf32, #tpu.memory_space<vmem>>, %arg2: memref<16x1xf32, #tpu.memory_space<vmem>>, %arg3: memref<65x32xf32, #tpu.memory_space<vmem>>, %arg4: memref<16x256xf32, #tpu.memory_space<vmem>>, %arg5: memref<16x1xf32, #tpu.memory_space<vmem>>, %arg6: memref<17x2xf32, #tpu.memory_space<vmem>>, %arg7: memref<16x2xf32, #tpu.memory_space<vmem>>) attributes {dimension_semantics = [], scalar_prefetch = 0 : i64, scratch_operands = 0 : i64, tpu.core_type = #tpu.core_type<tc>} {
    %c0 = arith.constant 0 : index
    %c0_0 = arith.constant 0 : index
    %0 = vector.load %arg0[%c0, %c0_0] : memref<8x72xf32, #tpu.memory_space<vmem>>, vector<8x72xf32>
    %1 = vector.extract_strided_slice %0 {offsets = [0, 0], sizes = [8, 65], strides = [1, 1]} : vector<8x72xf32> to vector<8x65xf32>
    %2 = vector.extract_strided_slice %0 {offsets = [0, 1], sizes = [8, 65], strides = [1, 1]} : vector<8x72xf32> to vector<8x65xf32>
    %3 = vector.extract_strided_slice %0 {offsets = [0, 2], sizes = [8, 65], strides = [1, 1]} : vector<8x72xf32> to vector<8x65xf32>
    %4 = vector.extract_strided_slice %0 {offsets = [0, 3], sizes = [8, 65], strides = [1, 1]} : vector<8x72xf32> to vector<8x65xf32>
    %5 = vector.extract_strided_slice %0 {offsets = [0, 4], sizes = [8, 65], strides = [1, 1]} : vector<8x72xf32> to vector<8x65xf32>
    %6 = vector.extract_strided_slice %0 {offsets = [0, 5], sizes = [8, 65], strides = [1, 1]} : vector<8x72xf32> to vector<8x65xf32>
    %7 = vector.extract_strided_slice %0 {offsets = [0, 6], sizes = [8, 65], strides = [1, 1]} : vector<8x72xf32> to vector<8x65xf32>
    %8 = vector.extract_strided_slice %0 {offsets = [0, 7], sizes = [8, 65], strides = [1, 1]} : vector<8x72xf32> to vector<8x65xf32>
    %9 = tpu.concatenate %1, %2, %3, %4, %5, %6, %7, %8 in 0 : vector<8x65xf32>, vector<8x65xf32>, vector<8x65xf32>, vector<8x65xf32>, vector<8x65xf32>, vector<8x65xf32>, vector<8x65xf32>, vector<8x65xf32> -> vector<64x65xf32>
    %c0_1 = arith.constant 0 : index
    %c0_2 = arith.constant 0 : index
    %10 = vector.load %arg1[%c0_1, %c0_2] : memref<16x64xf32, #tpu.memory_space<vmem>>, vector<16x64xf32>
    %cst = arith.constant dense<0.000000e+00> : vector<16x65xf32>
    %11 = tpu.matmul %10, %9, %cst {dimension_numbers = #tpu.dot_dimension_numbers<[1], [0], [0], [1], [0, 0, 1, 1], [], []>} : vector<16x64xf32>, vector<64x65xf32>, vector<16x65xf32> -> vector<16x65xf32>
    %c0_3 = arith.constant 0 : index
    %c0_4 = arith.constant 0 : index
    %12 = vector.load %arg2[%c0_3, %c0_4] : memref<16x1xf32, #tpu.memory_space<vmem>>, vector<16x1xf32>
    %13 = vector.broadcast %12 : vector<16x1xf32> to vector<16x65xf32>
    %14 = arith.addf %11, %13 : vector<16x65xf32>
    %cst_5 = arith.constant 0.000000e+00 : f32
    %15 = vector.broadcast %cst_5 : f32 to vector<16x65xf32>
    %16 = arith.cmpf ogt, %14, %15 : vector<16x65xf32>
    %17 = math.exp %14 : vector<16x65xf32>
    %cst_6 = arith.constant 1.000000e+00 : f32
    %18 = vector.broadcast %cst_6 : f32 to vector<16x65xf32>
    %19 = arith.subf %17, %18 : vector<16x65xf32>
    %20 = arith.select %16, %14, %19 : vector<16x65xi1>, vector<16x65xf32>
    %c0_7 = arith.constant 0 : index
    %c0_8 = arith.constant 0 : index
    %21 = vector.load %arg3[%c0_7, %c0_8] : memref<65x32xf32, #tpu.memory_space<vmem>>, vector<65x32xf32>
    %cst_9 = arith.constant dense<0.000000e+00> : vector<16x32xf32>
    %22 = tpu.matmul %20, %21, %cst_9 {dimension_numbers = #tpu.dot_dimension_numbers<[1], [0], [0], [1], [0, 0, 1, 1], [], []>} : vector<16x65xf32>, vector<65x32xf32>, vector<16x32xf32> -> vector<16x32xf32>
    %23 = vector.extract_strided_slice %22 {offsets = [0, 0], sizes = [16, 17], strides = [1, 1]} : vector<16x32xf32> to vector<16x17xf32>
    %24 = vector.extract_strided_slice %22 {offsets = [0, 1], sizes = [16, 17], strides = [1, 1]} : vector<16x32xf32> to vector<16x17xf32>
    %25 = vector.extract_strided_slice %22 {offsets = [0, 2], sizes = [16, 17], strides = [1, 1]} : vector<16x32xf32> to vector<16x17xf32>
    %26 = vector.extract_strided_slice %22 {offsets = [0, 3], sizes = [16, 17], strides = [1, 1]} : vector<16x32xf32> to vector<16x17xf32>
    %27 = vector.extract_strided_slice %22 {offsets = [0, 4], sizes = [16, 17], strides = [1, 1]} : vector<16x32xf32> to vector<16x17xf32>
    %28 = vector.extract_strided_slice %22 {offsets = [0, 5], sizes = [16, 17], strides = [1, 1]} : vector<16x32xf32> to vector<16x17xf32>
    %29 = vector.extract_strided_slice %22 {offsets = [0, 6], sizes = [16, 17], strides = [1, 1]} : vector<16x32xf32> to vector<16x17xf32>
    %30 = vector.extract_strided_slice %22 {offsets = [0, 7], sizes = [16, 17], strides = [1, 1]} : vector<16x32xf32> to vector<16x17xf32>
    %31 = vector.extract_strided_slice %22 {offsets = [0, 8], sizes = [16, 17], strides = [1, 1]} : vector<16x32xf32> to vector<16x17xf32>
    %32 = vector.extract_strided_slice %22 {offsets = [0, 9], sizes = [16, 17], strides = [1, 1]} : vector<16x32xf32> to vector<16x17xf32>
    %33 = vector.extract_strided_slice %22 {offsets = [0, 10], sizes = [16, 17], strides = [1, 1]} : vector<16x32xf32> to vector<16x17xf32>
    %34 = vector.extract_strided_slice %22 {offsets = [0, 11], sizes = [16, 17], strides = [1, 1]} : vector<16x32xf32> to vector<16x17xf32>
    %35 = vector.extract_strided_slice %22 {offsets = [0, 12], sizes = [16, 17], strides = [1, 1]} : vector<16x32xf32> to vector<16x17xf32>
    %36 = vector.extract_strided_slice %22 {offsets = [0, 13], sizes = [16, 17], strides = [1, 1]} : vector<16x32xf32> to vector<16x17xf32>
    %37 = vector.extract_strided_slice %22 {offsets = [0, 14], sizes = [16, 17], strides = [1, 1]} : vector<16x32xf32> to vector<16x17xf32>
    %38 = vector.extract_strided_slice %22 {offsets = [0, 15], sizes = [16, 17], strides = [1, 1]} : vector<16x32xf32> to vector<16x17xf32>
    %39 = tpu.concatenate %23, %24, %25, %26, %27, %28, %29, %30, %31, %32, %33, %34, %35, %36, %37, %38 in 0 : vector<16x17xf32>, vector<16x17xf32>, vector<16x17xf32>, vector<16x17xf32>, vector<16x17xf32>, vector<16x17xf32>, vector<16x17xf32>, vector<16x17xf32>, vector<16x17xf32>, vector<16x17xf32>, vector<16x17xf32>, vector<16x17xf32>, vector<16x17xf32>, vector<16x17xf32>, vector<16x17xf32>, vector<16x17xf32> -> vector<256x17xf32>
    %c0_10 = arith.constant 0 : index
    %c0_11 = arith.constant 0 : index
    %40 = vector.load %arg4[%c0_10, %c0_11] : memref<16x256xf32, #tpu.memory_space<vmem>>, vector<16x256xf32>
    %cst_12 = arith.constant dense<0.000000e+00> : vector<16x17xf32>
    %41 = tpu.matmul %40, %39, %cst_12 {dimension_numbers = #tpu.dot_dimension_numbers<[1], [0], [0], [1], [0, 0, 1, 1], [], []>} : vector<16x256xf32>, vector<256x17xf32>, vector<16x17xf32> -> vector<16x17xf32>
    %c0_13 = arith.constant 0 : index
    %c0_14 = arith.constant 0 : index
    %42 = vector.load %arg5[%c0_13, %c0_14] : memref<16x1xf32, #tpu.memory_space<vmem>>, vector<16x1xf32>
    %43 = vector.broadcast %42 : vector<16x1xf32> to vector<16x17xf32>
    %44 = arith.addf %41, %43 : vector<16x17xf32>
    %cst_15 = arith.constant 0.000000e+00 : f32
    %45 = vector.broadcast %cst_15 : f32 to vector<16x17xf32>
    %46 = arith.cmpf ogt, %44, %45 : vector<16x17xf32>
    %47 = math.exp %44 : vector<16x17xf32>
    %cst_16 = arith.constant 1.000000e+00 : f32
    %48 = vector.broadcast %cst_16 : f32 to vector<16x17xf32>
    %49 = arith.subf %47, %48 : vector<16x17xf32>
    %50 = arith.select %46, %44, %49 : vector<16x17xi1>, vector<16x17xf32>
    %c0_17 = arith.constant 0 : index
    %c0_18 = arith.constant 0 : index
    %51 = vector.load %arg6[%c0_17, %c0_18] : memref<17x2xf32, #tpu.memory_space<vmem>>, vector<17x2xf32>
    %cst_19 = arith.constant dense<0.000000e+00> : vector<16x2xf32>
    %52 = tpu.matmul %50, %51, %cst_19 {dimension_numbers = #tpu.dot_dimension_numbers<[1], [0], [0], [1], [0, 0, 1, 1], [], []>} : vector<16x17xf32>, vector<17x2xf32>, vector<16x2xf32> -> vector<16x2xf32>
    %c0_20 = arith.constant 0 : index
    %c0_21 = arith.constant 0 : index
    %53 = vector.load %arg7[%c0_20, %c0_21] : memref<16x2xf32, #tpu.memory_space<vmem>>, vector<16x2xf32>
    tpu.vector_store %arg7[%c0_20, %c0_21], %52 {strides = array<i32>} : memref<16x2xf32, #tpu.memory_space<vmem>>, vector<16x2xf32>,
    return
  }
}

</mosaic_0001>

<llo_original>
// kernel: tpu_custom_call.1
$region0: #{tpu_custom_call.1}
  #allocation0 [shape = 'u32[]', space=smem, size = 0x4, offset = 0x4, fixed_abs, tag = 'smem constant byte address 0x4 - core index']
  #allocation1 [shape = 'u32[144,128]{1,0:T(1,128)}', space=vmem, size = 0x12000, scoped, tag = 'internal scratch']
  %s0 = inlined_call_operand.vmem [shape: f32[8,72], index: 0, kind: input, shape index: {}]
  %s1 = inlined_call_operand.vmem [shape: f32[16,64], index: 1, kind: input, shape index: {}]
  %s2 = inlined_call_operand.vmem [shape: f32[16,1], index: 2, kind: input, shape index: {}]
  %s3 = inlined_call_operand.vmem [shape: f32[65,32], index: 3, kind: input, shape index: {}]
  %s4 = inlined_call_operand.vmem [shape: f32[16,256], index: 4, kind: input, shape index: {}]
  %s5 = inlined_call_operand.vmem [shape: f32[16,1], index: 5, kind: input, shape index: {}]
  %s6 = inlined_call_operand.vmem [shape: f32[17,2], index: 6, kind: input, shape index: {}]
  %s7 = inlined_call_operand.vmem [shape: f32[16,2], index: 7, kind: output, shape index: {}]
  %s8 = sld [smem:[#allocation0]]
  $region38: #{tpu_custom_call.1} parent=0
    _
  %s10 = ssub.s32 1, %s8
  %s11 = scalar_select 0, %s10, %s8
  // Predicated region
  $region2: #{tpu_custom_call.1} parent=0 // pred_check
    _
  $region3: #{tpu_custom_call.1} parent=0 // pred_check_branch
    %13 = sbr.rel (0) target = $region5
  $region4: #{tpu_custom_call.1} parent=0 // pred_region
    _
  $region5: #{tpu_custom_call.1} parent=0 // pred_fallthru
    _
  // Predicated region
  $region6: #{tpu_custom_call.1} parent=0 // pred_check
    _
  $region7: #{tpu_custom_call.1} parent=0 // pred_check_branch
    %15 = sbr.rel (0) target = $region9
  $region8: #{tpu_custom_call.1} parent=0 // pred_region
    _
  $region9: #{tpu_custom_call.1} parent=0 // pred_fallthru
    _
  // Predicated region
  $region10: #{tpu_custom_call.1} parent=0 // pred_check
    _
  $region11: #{tpu_custom_call.1} parent=0 // pred_check_branch
    %17 = sbr.rel (0) target = $region13
  $region12: #{tpu_custom_call.1} parent=0 // pred_region
    _
  $region13: #{tpu_custom_call.1} parent=0 // pred_fallthru
    _
  // Predicated region
  $region14: #{tpu_custom_call.1} parent=0 // pred_check
    _
  $region15: #{tpu_custom_call.1} parent=0 // pred_check_branch
    %19 = sbr.rel (0) target = $region17
  $region16: #{tpu_custom_call.1} parent=0 // pred_region
    _
  $region17: #{tpu_custom_call.1} parent=0 // pred_fallthru
    _
  // Predicated region
  $region18: #{tpu_custom_call.1} parent=0 // pred_check
    _
  $region19: #{tpu_custom_call.1} parent=0 // pred_check_branch
    %21 = sbr.rel (0) target = $region21
  $region20: #{tpu_custom_call.1} parent=0 // pred_region
    _
  $region21: #{tpu_custom_call.1} parent=0 // pred_fallthru
    _
  // Predicated region
  $region22: #{tpu_custom_call.1} parent=0 // pred_check
    _
  $region23: #{tpu_custom_call.1} parent=0 // pred_check_branch
    %23 = sbr.rel (0) target = $region25
  $region24: #{tpu_custom_call.1} parent=0 // pred_region
    _
  $region25: #{tpu_custom_call.1} parent=0 // pred_fallthru
    _
  // Predicated region
  $region26: #{tpu_custom_call.1} parent=0 // pred_check
    _
  $region27: #{tpu_custom_call.1} parent=0 // pred_check_branch
    %25 = sbr.rel (0) target = $region29
  $region28: #{tpu_custom_call.1} parent=0 // pred_region
    _
  $region29: #{tpu_custom_call.1} parent=0 // pred_fallthru
    _
  %v26 = vld [vmem:[%s0] sm:$0xff]
  %28 = vrot.lane.b32.xlu0 %v26, 127
  %v29 = vpop.permute.xlu0 %28
  %31 = vrot.lane.b32.xlu0 %v26, 126
  %v32 = vpop.permute.xlu0 %31
  %34 = vrot.lane.b32.xlu0 %v26, 125
  %v35 = vpop.permute.xlu0 %34
  %37 = vrot.lane.b32.xlu0 %v26, 124
  %v38 = vpop.permute.xlu0 %37
  %40 = vrot.lane.b32.xlu0 %v26, 123
  %v41 = vpop.permute.xlu0 %40
  %43 = vrot.lane.b32.xlu0 %v26, 122
  %v44 = vpop.permute.xlu0 %43
  %46 = vrot.lane.b32.xlu0 %v26, 121
  %v47 = vpop.permute.xlu0 %46
  %v49 = vld [vmem:[%s1] sm:$0xff]
  %v50 = vld [vmem:[%s1 + $0x8] sm:$0xff]
  %v51 = vld [vmem:[%s2] sm:$0xff]
  %v52 = vld [vmem:[%s2 + $0x8] sm:$0xff]
  %54 = vset.pattern.permute.xlu0 0
  %55 = vperm.xlu0 %54, %v51
  %v56 = vpop.permute.xlu0 %55
  %59 = vset.pattern.permute.xlu0 0
  %60 = vperm.xlu0 %59, %v52
  %v61 = vpop.permute.xlu0 %60
  %vm63 = vcmask 523264
  %v65 = vsel %vm63, %v49, 0
  %v68 = vsel %vm63, %v50, 0
  %70 = vmatprep.subr.mxu0 0.0
  %71 = vmatpush1.msra.mxu0 %v26
  %72 = vmatprep.subr.mxu0 0.0
  %73 = vmatpush1.msra.mxu0 %v29
  %74 = vmatprep.subr.mxu0 0.0
  %75 = vmatpush1.msra.mxu0 %v32
  %76 = vmatprep.subr.mxu0 0.0
  %77 = vmatpush1.msra.mxu0 %v35
  %78 = vmatprep.subr.mxu0 0.0
  %79 = vmatpush1.msra.mxu0 %v38
  %80 = vmatprep.subr.mxu0 0.0
  %81 = vmatpush1.msra.mxu0 %v41
  %82 = vmatprep.subr.mxu0 0.0
  %83 = vmatpush1.msra.mxu0 %v44
  %84 = vmatprep.subr.mxu0 0.0
  %85 = vmatpush1.msra.mxu0 %v47
  %86 = vmatprep.subr.mxu0 0.0
  %87 = vmatpush1.msra.mxu0 0.0
  %88 = vmatprep.subr.mxu0 0.0
  %89 = vmatpush1.msra.mxu0 0.0
  %90 = vmatprep.subr.mxu0 0.0
  %91 = vmatpush1.msra.mxu0 0.0
  %92 = vmatprep.subr.mxu0 0.0
  %93 = vmatpush1.msra.mxu0 0.0
  %94 = vmatprep.subr.mxu0 0.0
  %95 = vmatpush1.msra.mxu0 0.0
  %96 = vmatprep.subr.mxu0 0.0
  %97 = vmatpush1.msra.mxu0 0.0
  %98 = vmatprep.subr.mxu0 0.0
  %99 = vmatpush1.msra.mxu0 0.0
  %100 = vmatprep.subr.mxu0 0.0
  %101 = vmatpush1.msra.mxu0 0.0
  %102 = vmatprep.subr.mxu0 0.0
  %103 = vmatpush1.msra.mxu0 0.0
  %104 = vmatprep.subr.mxu0 0.0
  %105 = vmatpush1.msra.mxu0 0.0
  %106 = vmatprep.subr.mxu0 0.0
  %107 = vmatpush1.msra.mxu0 0.0
  %108 = vmatprep.subr.mxu0 0.0
  %109 = vmatpush1.msra.mxu0 0.0
  %110 = vmatprep.subr.mxu0 0.0
  %111 = vmatpush1.msra.mxu0 0.0
  %112 = vmatprep.subr.mxu0 0.0
  %113 = vmatpush1.msra.mxu0 0.0
  %114 = vmatprep.subr.mxu0 0.0
  %115 = vmatpush1.msra.mxu0 0.0
  %116 = vmatprep.subr.mxu0 0.0
  %117 = vmatpush1.msra.mxu0 0.0
  %118 = vmatprep.subr.mxu0 0.0
  %119 = vmatpush1.msra.mxu0 0.0
  %120 = vmatprep.subr.mxu0 0.0
  %121 = vmatpush1.msra.mxu0 0.0
  %122 = vmatprep.subr.mxu0 0.0
  %123 = vmatpush1.msra.mxu0 0.0
  %124 = vmatprep.subr.mxu0 0.0
  %125 = vmatpush1.msra.mxu0 0.0
  %126 = vmatprep.subr.mxu0 0.0
  %127 = vmatpush1.msra.mxu0 0.0
  %128 = vmatprep.subr.mxu0 0.0
  %129 = vmatpush1.msra.mxu0 0.0
  %130 = vmatprep.subr.mxu0 0.0
  %131 = vmatpush1.msra.mxu0 0.0
  %132 = vmatprep.subr.mxu0 0.0
  %133 = vmatpush1.msra.mxu0 0.0
  %134 = vmatprep.mubr.f32.mxu0 0.0
  %135 = vmatmul.mubr.f32.gmra.mrb[0].mxu0 %v65
  %v136 = vpop.f32.mrb[0].mxu0
  %v137 = vadd.f32 %v56, %v136
  %v138 = vpop.f32.mrb[0].mxu0
  %139 = vmatprep.mubr.f32.mxu0 0.0
  %140 = vmatmul.mubr.f32.gmra.mrb[0].mxu0 %v68
  %v141 = vpop.f32.mrb[0].mxu0
  %v142 = vadd.f32 %v61, %v141
  %v143 = vpop.f32.mrb[0].mxu0
  %144 = vdwg.mxu0
  %vm145 = vcmp.gt.f32.partialorder %v137, 0.0
  %vm146 = vcmp.gt.f32.partialorder %v142, 0.0
  %v147 = vmul.f32 %v137, 1.442695
  %v148 = vpow.pop %v147
  %v149 = vmul.f32 %v142, 1.442695
  %v150 = vpow.pop %v149
  %v151 = vsub.f32 %v148, 1.0
  %v152 = vsub.f32 %v150, 1.0
  %v153 = vsel %vm145, %v137, %v151
  %v154 = vsel %vm146, %v142, %v152
  %v155 = vld [vmem:[%s3] sm:$0xff]
  %v156 = vld [vmem:[%s3 + $0x8] sm:$0xff]
  %v157 = vld [vmem:[%s3 + $0x10] sm:$0xff]
  %v158 = vld [vmem:[%s3 + $0x18] sm:$0xff]
  %v159 = vld [vmem:[%s3 + $0x20] sm:$0xff]
  %v160 = vld [vmem:[%s3 + $0x28] sm:$0xff]
  %v161 = vld [vmem:[%s3 + $0x30] sm:$0xff]
  %v162 = vld [vmem:[%s3 + $0x38] sm:$0xff]
  %v163 = vld [vmem:[%s3 + $0x40] sm:$0x1]
  %vm164 = vcmask 531456
  %v166 = vsel %vm164, %v153, 0
  %v169 = vsel %vm164, %v154, 0
  %vm171 = vcmask 1040384
  %v173 = vsel %vm171, %v163, 0
  %175 = vmatprep.subr.mxu0 0.0
  %176 = vmatpush1.msra.mxu0 %v155
  %177 = vmatprep.subr.mxu0 0.0
  %178 = vmatpush1.msra.mxu0 %v156
  %179 = vmatprep.subr.mxu0 0.0
  %180 = vmatpush1.msra.mxu0 %v157
  %181 = vmatprep.subr.mxu0 0.0
  %182 = vmatpush1.msra.mxu0 %v158
  %183 = vmatprep.subr.mxu0 0.0
  %184 = vmatpush1.msra.mxu0 %v159
  %185 = vmatprep.subr.mxu0 0.0
  %186 = vmatpush1.msra.mxu0 %v160
  %187 = vmatprep.subr.mxu0 0.0
  %188 = vmatpush1.msra.mxu0 %v161
  %189 = vmatprep.subr.mxu0 0.0
  %190 = vmatpush1.msra.mxu0 %v162
  %191 = vmatprep.subr.mxu0 0.0
  %192 = vmatpush1.msra.mxu0 %v173
  %193 = vmatprep.subr.mxu0 0.0
  %194 = vmatpush1.msra.mxu0 0.0
  %195 = vmatprep.subr.mxu0 0.0
  %196 = vmatpush1.msra.mxu0 0.0
  %197 = vmatprep.subr.mxu0 0.0
  %198 = vmatpush1.msra.mxu0 0.0
  %199 = vmatprep.subr.mxu0 0.0
  %200 = vmatpush1.msra.mxu0 0.0
  %201 = vmatprep.subr.mxu0 0.0
  %202 = vmatpush1.msra.mxu0 0.0
  %203 = vmatprep.subr.mxu0 0.0
  %204 = vmatpush1.msra.mxu0 0.0
  %205 = vmatprep.subr.mxu0 0.0
  %206 = vmatpush1.msra.mxu0 0.0
  %207 = vmatprep.subr.mxu0 0.0
  %208 = vmatpush1.msra.mxu0 0.0
  %209 = vmatprep.subr.mxu0 0.0
  %210 = vmatpush1.msra.mxu0 0.0
  %211 = vmatprep.subr.mxu0 0.0
  %212 = vmatpush1.msra.mxu0 0.0
  %213 = vmatprep.subr.mxu0 0.0
  %214 = vmatpush1.msra.mxu0 0.0
  %215 = vmatprep.subr.mxu0 0.0
  %216 = vmatpush1.msra.mxu0 0.0
  %217 = vmatprep.subr.mxu0 0.0
  %218 = vmatpush1.msra.mxu0 0.0
  %219 = vmatprep.subr.mxu0 0.0
  %220 = vmatpush1.msra.mxu0 0.0
  %221 = vmatprep.subr.mxu0 0.0
  %222 = vmatpush1.msra.mxu0 0.0
  %223 = vmatprep.subr.mxu0 0.0
  %224 = vmatpush1.msra.mxu0 0.0
  %225 = vmatprep.subr.mxu0 0.0
  %226 = vmatpush1.msra.mxu0 0.0
  %227 = vmatprep.subr.mxu0 0.0
  %228 = vmatpush1.msra.mxu0 0.0
  %229 = vmatprep.subr.mxu0 0.0
  %230 = vmatpush1.msra.mxu0 0.0
  %231 = vmatprep.subr.mxu0 0.0
  %232 = vmatpush1.msra.mxu0 0.0
  %233 = vmatprep.subr.mxu0 0.0
  %234 = vmatpush1.msra.mxu0 0.0
  %235 = vmatprep.subr.mxu0 0.0
  %236 = vmatpush1.msra.mxu0 0.0
  %237 = vmatprep.subr.mxu0 0.0
  %238 = vmatpush1.msra.mxu0 0.0
  %239 = vmatprep.mubr.f32.mxu0 0.0
  %240 = vmatmul.mubr.f32.gmra.mrb[0].mxu0 %v166
  %v241 = vpop.f32.mrb[0].mxu0
  %v242 = vadd.f32 0.0, %v241
  %v243 = vpop.f32.mrb[0].mxu0
  %244 = vmatprep.mubr.f32.mxu0 0.0
  %245 = vmatmul.mubr.f32.gmra.mrb[0].mxu0 %v169
  %v246 = vpop.f32.mrb[0].mxu0
  %v247 = vadd.f32 0.0, %v246
  %v248 = vpop.f32.mrb[0].mxu0
  %249 = vdwg.mxu0
  %252 = vrot.lane.b32.xlu0 %v242, 127
  %v253 = vpop.permute.xlu0 %252
  %254 = vrot.lane.b32.xlu0 %v247, 127
  %v255 = vpop.permute.xlu0 %254
  %258 = vrot.lane.b32.xlu0 %v242, 126
  %v259 = vpop.permute.xlu0 %258
  %260 = vrot.lane.b32.xlu0 %v247, 126
  %v261 = vpop.permute.xlu0 %260
  %264 = vrot.lane.b32.xlu0 %v242, 125
  %v265 = vpop.permute.xlu0 %264
  %266 = vrot.lane.b32.xlu0 %v247, 125
  %v267 = vpop.permute.xlu0 %266
  %270 = vrot.lane.b32.xlu0 %v242, 124
  %v271 = vpop.permute.xlu0 %270
  %272 = vrot.lane.b32.xlu0 %v247, 124
  %v273 = vpop.permute.xlu0 %272
  %276 = vrot.lane.b32.xlu0 %v242, 123
  %v277 = vpop.permute.xlu0 %276
  %278 = vrot.lane.b32.xlu0 %v247, 123
  %v279 = vpop.permute.xlu0 %278
  %282 = vrot.lane.b32.xlu0 %v242, 122
  %v283 = vpop.permute.xlu0 %282
  %284 = vrot.lane.b32.xlu0 %v247, 122
  %v285 = vpop.permute.xlu0 %284
  %288 = vrot.lane.b32.xlu0 %v242, 121
  %v289 = vpop.permute.xlu0 %288
  %290 = vrot.lane.b32.xlu0 %v247, 121
  %v291 = vpop.permute.xlu0 %290
  %294 = vrot.lane.b32.xlu0 %v242, 120
  %v295 = vpop.permute.xlu0 %294
  %296 = vrot.lane.b32.xlu0 %v247, 120
  %v297 = vpop.permute.xlu0 %296
  %300 = vrot.lane.b32.xlu0 %v242, 119
  %v301 = vpop.permute.xlu0 %300
  %302 = vrot.lane.b32.xlu0 %v247, 119
  %v303 = vpop.permute.xlu0 %302
  %306 = vrot.lane.b32.xlu0 %v242, 118
  %v307 = vpop.permute.xlu0 %306
  %308 = vrot.lane.b32.xlu0 %v247, 118
  %v309 = vpop.permute.xlu0 %308
  %312 = vrot.lane.b32.xlu0 %v242, 117
  %v313 = vpop.permute.xlu0 %312
  %314 = vrot.lane.b32.xlu0 %v247, 117
  %v315 = vpop.permute.xlu0 %314
  %318 = vrot.lane.b32.xlu0 %v242, 116
  %v319 = vpop.permute.xlu0 %318
  %320 = vrot.lane.b32.xlu0 %v247, 116
  %v321 = vpop.permute.xlu0 %320
  %324 = vrot.lane.b32.xlu0 %v242, 115
  %v325 = vpop.permute.xlu0 %324
  %326 = vrot.lane.b32.xlu0 %v247, 115
  %v327 = vpop.permute.xlu0 %326
  %330 = vrot.lane.b32.xlu0 %v242, 114
  %v331 = vpop.permute.xlu0 %330
  %332 = vrot.lane.b32.xlu0 %v247, 114
  %v333 = vpop.permute.xlu0 %332
  %336 = vrot.lane.b32.xlu0 %v242, 113
  %v337 = vpop.permute.xlu0 %336
  %338 = vrot.lane.b32.xlu0 %v247, 113
  %v339 = vpop.permute.xlu0 %338
  %v342 = vld [vmem:[%s4] sm:$0xff]
  %v343 = vld [vmem:[%s4 + $0x8] sm:$0xff]
  %v344 = vld [vmem:[%s4 + $0x10] sm:$0xff]
  %v345 = vld [vmem:[%s4 + $0x18] sm:$0xff]
  %v346 = vld [vmem:[%s5] sm:$0xff]
  %v347 = vld [vmem:[%s5 + $0x8] sm:$0xff]
  %349 = vset.pattern.permute.xlu0 0
  %350 = vperm.xlu0 %349, %v346
  %v351 = vpop.permute.xlu0 %350
  %354 = vset.pattern.permute.xlu0 0
  %355 = vperm.xlu0 %354, %v347
  %v356 = vpop.permute.xlu0 %355
  %358 = vmatprep.subr.mxu0 0.0
  %359 = vmatpush1.msra.mxu0 %v242
  %360 = vmatprep.subr.mxu0 0.0
  %361 = vmatpush1.msra.mxu0 %v247
  %362 = vmatprep.subr.mxu0 0.0
  %363 = vmatpush1.msra.mxu0 %v253
  %364 = vmatprep.subr.mxu0 0.0
  %365 = vmatpush1.msra.mxu0 %v255
  %366 = vmatprep.subr.mxu0 0.0
  %367 = vmatpush1.msra.mxu0 %v259
  %368 = vmatprep.subr.mxu0 0.0
  %369 = vmatpush1.msra.mxu0 %v261
  %370 = vmatprep.subr.mxu0 0.0
  %371 = vmatpush1.msra.mxu0 %v265
  %372 = vmatprep.subr.mxu0 0.0
  %373 = vmatpush1.msra.mxu0 %v267
  %374 = vmatprep.subr.mxu0 0.0
  %375 = vmatpush1.msra.mxu0 %v271
  %376 = vmatprep.subr.mxu0 0.0
  %377 = vmatpush1.msra.mxu0 %v273
  %378 = vmatprep.subr.mxu0 0.0
  %379 = vmatpush1.msra.mxu0 %v277
  %380 = vmatprep.subr.mxu0 0.0
  %381 = vmatpush1.msra.mxu0 %v279
  %382 = vmatprep.subr.mxu0 0.0
  %383 = vmatpush1.msra.mxu0 %v283
  %384 = vmatprep.subr.mxu0 0.0
  %385 = vmatpush1.msra.mxu0 %v285
  %386 = vmatprep.subr.mxu0 0.0
  %387 = vmatpush1.msra.mxu0 %v289
  %388 = vmatprep.subr.mxu0 0.0
  %389 = vmatpush1.msra.mxu0 %v291
  %390 = vmatprep.subr.mxu0 0.0
  %391 = vmatpush1.msra.mxu0 %v295
  %392 = vmatprep.subr.mxu0 0.0
  %393 = vmatpush1.msra.mxu0 %v297
  %394 = vmatprep.subr.mxu0 0.0
  %395 = vmatpush1.msra.mxu0 %v301
  %396 = vmatprep.subr.mxu0 0.0
  %397 = vmatpush1.msra.mxu0 %v303
  %398 = vmatprep.subr.mxu0 0.0
  %399 = vmatpush1.msra.mxu0 %v307
  %400 = vmatprep.subr.mxu0 0.0
  %401 = vmatpush1.msra.mxu0 %v309
  %402 = vmatprep.subr.mxu0 0.0
  %403 = vmatpush1.msra.mxu0 %v313
  %404 = vmatprep.subr.mxu0 0.0
  %405 = vmatpush1.msra.mxu0 %v315
  %406 = vmatprep.subr.mxu0 0.0
  %407 = vmatpush1.msra.mxu0 %v319
  %408 = vmatprep.subr.mxu0 0.0
  %409 = vmatpush1.msra.mxu0 %v321
  %410 = vmatprep.subr.mxu0 0.0
  %411 = vmatpush1.msra.mxu0 %v325
  %412 = vmatprep.subr.mxu0 0.0
  %413 = vmatpush1.msra.mxu0 %v327
  %414 = vmatprep.subr.mxu0 0.0
  %415 = vmatpush1.msra.mxu0 %v331
  %416 = vmatprep.subr.mxu0 0.0
  %417 = vmatpush1.msra.mxu0 %v333
  %418 = vmatprep.subr.mxu0 0.0
  %419 = vmatpush1.msra.mxu0 %v337
  %420 = vmatprep.subr.mxu0 0.0
  %421 = vmatpush1.msra.mxu0 %v339
  %422 = vmatprep.mubr.f32.mxu0 %v343
  %423 = vmatmul.mubr.f32.gmra.mrb[0].mxu0 %v342
  %v424 = vpop.f32.mrb[0].mxu0
  %v425 = vadd.f32 %v351, %v424
  %v426 = vpop.f32.mrb[0].mxu0
  %427 = vmatprep.mubr.f32.mxu0 %v345
  %428 = vmatmul.mubr.f32.gmra.mrb[0].mxu0 %v344
  %v429 = vpop.f32.mrb[0].mxu0
  %v430 = vadd.f32 %v356, %v429
  %v431 = vpop.f32.mrb[0].mxu0
  %432 = vdwg.mxu0
  %vm433 = vcmp.gt.f32.partialorder %v425, 0.0
  %vm434 = vcmp.gt.f32.partialorder %v430, 0.0
  %v435 = vmul.f32 %v425, 1.442695
  %v436 = vpow.pop %v435
  %v437 = vmul.f32 %v430, 1.442695
  %v438 = vpow.pop %v437
  %v439 = vsub.f32 %v436, 1.0
  %v440 = vsub.f32 %v438, 1.0
  %v441 = vsel %vm433, %v425, %v439
  %v442 = vsel %vm434, %v430, %v440
  %v443 = vld [vmem:[%s6] sm:$0xff]
  %v444 = vld [vmem:[%s6 + $0x8] sm:$0xff]
  %v445 = vld [vmem:[%s6 + $0x10] sm:$0x1]
  %vm446 = vcmask 138240
  %v448 = vsel %vm446, %v441, 0
  %v451 = vsel %vm446, %v442, 0
  %v454 = vsel %vm171, %v445, 0
  %456 = vmatprep.subr.mxu0 0.0
  %457 = vmatpush1.msra.mxu0 %v443
  %458 = vmatprep.subr.mxu0 0.0
  %459 = vmatpush1.msra.mxu0 %v444
  %460 = vmatprep.subr.mxu0 0.0
  %461 = vmatpush1.msra.mxu0 %v454
  %462 = vmatprep.subr.mxu0 0.0
  %463 = vmatpush1.msra.mxu0 0.0
  %464 = vmatprep.subr.mxu0 0.0
  %465 = vmatpush1.msra.mxu0 0.0
  %466 = vmatprep.subr.mxu0 0.0
  %467 = vmatpush1.msra.mxu0 0.0
  %468 = vmatprep.subr.mxu0 0.0
  %469 = vmatpush1.msra.mxu0 0.0
  %470 = vmatprep.subr.mxu0 0.0
  %471 = vmatpush1.msra.mxu0 0.0
  %472 = vmatprep.subr.mxu0 0.0
  %473 = vmatpush1.msra.mxu0 0.0
  %474 = vmatprep.subr.mxu0 0.0
  %475 = vmatpush1.msra.mxu0 0.0
  %476 = vmatprep.subr.mxu0 0.0
  %477 = vmatpush1.msra.mxu0 0.0
  %478 = vmatprep.subr.mxu0 0.0
  %479 = vmatpush1.msra.mxu0 0.0
  %480 = vmatprep.subr.mxu0 0.0
  %481 = vmatpush1.msra.mxu0 0.0
  %482 = vmatprep.subr.mxu0 0.0
  %483 = vmatpush1.msra.mxu0 0.0
  %484 = vmatprep.subr.mxu0 0.0
  %485 = vmatpush1.msra.mxu0 0.0
  %486 = vmatprep.subr.mxu0 0.0
  %487 = vmatpush1.msra.mxu0 0.0
  %488 = vmatprep.subr.mxu0 0.0
  %489 = vmatpush1.msra.mxu0 0.0
  %490 = vmatprep.subr.mxu0 0.0
  %491 = vmatpush1.msra.mxu0 0.0
  %492 = vmatprep.subr.mxu0 0.0
  %493 = vmatpush1.msra.mxu0 0.0
  %494 = vmatprep.subr.mxu0 0.0
  %495 = vmatpush1.msra.mxu0 0.0
  %496 = vmatprep.subr.mxu0 0.0
  %497 = vmatpush1.msra.mxu0 0.0
  %498 = vmatprep.subr.mxu0 0.0
  %499 = vmatpush1.msra.mxu0 0.0
  %500 = vmatprep.subr.mxu0 0.0
  %501 = vmatpush1.msra.mxu0 0.0
  %502 = vmatprep.subr.mxu0 0.0
  %503 = vmatpush1.msra.mxu0 0.0
  %504 = vmatprep.subr.mxu0 0.0
  %505 = vmatpush1.msra.mxu0 0.0
  %506 = vmatprep.subr.mxu0 0.0
  %507 = vmatpush1.msra.mxu0 0.0
  %508 = vmatprep.subr.mxu0 0.0
  %509 = vmatpush1.msra.mxu0 0.0
  %510 = vmatprep.subr.mxu0 0.0
  %511 = vmatpush1.msra.mxu0 0.0
  %512 = vmatprep.subr.mxu0 0.0
  %513 = vmatpush1.msra.mxu0 0.0
  %514 = vmatprep.subr.mxu0 0.0
  %515 = vmatpush1.msra.mxu0 0.0
  %516 = vmatprep.subr.mxu0 0.0
  %517 = vmatpush1.msra.mxu0 0.0
  %518 = vmatprep.subr.mxu0 0.0
  %519 = vmatpush1.msra.mxu0 0.0
  %520 = vmatprep.mubr.f32.mxu0 0.0
  %521 = vmatmul.mubr.f32.gmra.mrb[0].mxu0 %v448
  %v522 = vpop.f32.mrb[0].mxu0
  %v523 = vadd.f32 0.0, %v522
  %v524 = vpop.f32.mrb[0].mxu0
  %525 = vmatprep.mubr.f32.mxu0 0.0
  %526 = vmatmul.mubr.f32.gmra.mrb[0].mxu0 %v451
  %v527 = vpop.f32.mrb[0].mxu0
  %v528 = vadd.f32 0.0, %v527
  %v529 = vpop.f32.mrb[0].mxu0
  %530 = vdwg.mxu0
  %vm531 = vcmask 15360
  %532 = vst.msk [vmem:[%s7] sm:$0xff] %vm531, %v523
  %533 = vst.msk [vmem:[%s7 + $0x8] sm:$0xff] %vm531, %v528
  // Predicated region
  $region30: #{tpu_custom_call.1} parent=0 // pred_check
    _
  $region31: #{tpu_custom_call.1} parent=0 // pred_check_branch
    %535 = sbr.rel (0) target = $region33
  $region32: #{tpu_custom_call.1} parent=0 // pred_region
    _
  $region33: #{tpu_custom_call.1} parent=0 // pred_fallthru
    _
  // Predicated region
  $region34: #{tpu_custom_call.1} parent=0 // pred_check
    _
  $region35: #{tpu_custom_call.1} parent=0 // pred_check_branch
    %537 = sbr.rel (0) target = $region37
  $region36: #{tpu_custom_call.1} parent=0 // pred_region
    _
  $region37: #{tpu_custom_call.1} parent=0 // pred_fallthru
    _

</llo_original>
